<compile_context>
chip_gen: v5e
topology: v5e:2x2
jax: 0.10.0
libtpu: 0.0.40
codegen_flags: <defaults>
</compile_context>

<pallas_src>
import functools

import jax
import jax.numpy as jnp
from jax.experimental import pallas as pl
from jax.experimental.pallas import tpu as pltpu

HIDDEN = 128
_LANE = 128
_VPU_LAYER1_MAX_K = 8      # below this, layer 1 runs on the VPU instead of the MXU
_MAX_BATCH_TILE = 1024     # single-block threshold; larger B splits into balanced blocks

# layout of the packed (128, 8) small-parameter block (all f32)
_COL_B1, _COL_B2, _COL_WL1P, _COL_BL1, _COL_WL2, _COL_WRH, _COL_SCALARS = range(7)
_ROW_BL2, _ROW_WRP, _ROW_BR = 0, 1, 2


def _fused_value_kernel(input_dim,
                        s_ref,      # (input_dim, TB) f32  state, feature-major
                        p_ref,      # (1, TB)         f32  action parameter row
                        w1_ref,     # (128, input_dim) f32
                        w2_ref,     # (128, 128)      bf16
                        wl1_ref,    # (128, 128)      bf16
                        small_ref,  # (128, 8)        f32  packed small params
                        out_ref):   # (2, TB)         f32  row0=left, row1=right
    p = p_ref[...]                                            # (1, TB)
    small = small_ref[...]
    b1 = small[:, _COL_B1:_COL_B1 + 1]                        # (128, 1)
    b2 = small[:, _COL_B2:_COL_B2 + 1]
    wl1p = small[:, _COL_WL1P:_COL_WL1P + 1]
    bl1 = small[:, _COL_BL1:_COL_BL1 + 1]
    wl2 = small[:, _COL_WL2:_COL_WL2 + 1]
    wrh = small[:, _COL_WRH:_COL_WRH + 1]
    bl2 = small[_ROW_BL2:_ROW_BL2 + 1, _COL_SCALARS:_COL_SCALARS + 1]   # (1, 1)
    wrp = small[_ROW_WRP:_ROW_WRP + 1, _COL_SCALARS:_COL_SCALARS + 1]
    br = small[_ROW_BR:_ROW_BR + 1, _COL_SCALARS:_COL_SCALARS + 1]

    # ---- shared trunk (feature-major) ---------------------------------------
    if input_dim <= _VPU_LAYER1_MAX_K:
        # K is tiny (MountainCar: 2): broadcast outer-product FMAs on the VPU.
        h = b1
        for k in range(input_dim):
            h = h + w1_ref[:, k:k + 1] * s_ref[k:k + 1, :]    # (128,1)*(1,TB)
    else:
        h = jnp.dot(w1_ref[...], s_ref[...],
                    preferred_element_type=jnp.float32) + b1
    h = jnp.maximum(h, 0.0)                                   # (128, TB) f32

    # layer 2 on the MXU: bf16 inputs, f32 accumulation.
    h = jnp.dot(w2_ref[...], h.astype(jnp.bfloat16),
                preferred_element_type=jnp.float32) + b2
    h = jnp.maximum(h, 0.0)                                   # (128, TB) f32

    # ---- left head: Linear(129,128) -> ReLU -> Linear(128,1) ----------------
    # concat([h, p]) @ W  ==  W_h @ h  +  wl1_p (x) p   (p-term on the VPU)
    z = (jnp.dot(wl1_ref[...], h.astype(jnp.bfloat16),
                 preferred_element_type=jnp.float32)
         + wl1p * p + bl1)
    z = jnp.maximum(z, 0.0)                                   # (128, TB)
    # 128 -> 1 projection: VPU multiply + sublane reduce -> lane-dense (1, TB).
    out_l = jnp.sum(z * wl2, axis=0, keepdims=True) + bl2

    # ---- right head: Linear(129,1) ------------------------------------------
    out_r = jnp.sum(h * wrh, axis=0, keepdims=True) + wrp * p + br

    out_ref[0:1, :] = out_l
    out_ref[1:2, :] = out_r


def _data_spec(rows, tb):
    # first (feature) dim full, batch (lane) dim tiled by the grid
    return pl.BlockSpec((rows, tb), lambda i: (0, i))


def _resident_spec(shape):
    # Same block every grid step -> stays VMEM resident, never re-DMA'd.
    # TODO(synk): pipeline_mode=pl.Buffered(1) would also drop the unused
    # second weight buffer (~70 KiB); left at the default double-buffering to
    # stay on the well-trodden compile path.
    return pl.BlockSpec(shape, lambda i: (0,) * len(shape))


@jax.jit
def value_forward_both(params, state, action_param):
    """Fused forward: returns (left_value, right_value), each (B, 1)."""
    B, input_dim = state.shape
    state_t = state.astype(jnp.float32).T                      # (input_dim, B)
    p_row = action_param.astype(jnp.float32).reshape(1, B)     # (1, B)

    if B <= _MAX_BATCH_TILE:
        # Tiny/medium batch (RL inference): one block, no padding, no extra
        # XLA ops on the latency-critical path.
        tb, b_pad, nb = B, B, 1
    else:
        # Even number of balanced, lane-aligned blocks so the "parallel" grid
        # axis splits evenly across v7x's two TensorCores.
        nb = pl.cdiv(B, _MAX_BATCH_TILE)
        nb += nb & 1
        tb = pl.cdiv(pl.cdiv(B, nb), _LANE) * _LANE
        b_pad = nb * tb
        state_t = jnp.pad(state_t, ((0, 0), (0, b_pad - B)))
        p_row = jnp.pad(p_row, ((0, 0), (0, b_pad - B)))

    out = pl.pallas_call(
        functools.partial(_fused_value_kernel, input_dim),
        out_shape=jax.ShapeDtypeStruct((2, b_pad), jnp.float32),
        grid=(nb,),
        in_specs=[
            _data_spec(input_dim, tb),                  # state (feature-major)
            _data_spec(1, tb),                          # action parameter row
            _resident_spec(params["w1_t"].shape),       # (128, input_dim) f32
            _resident_spec(params["w2_t"].shape),       # (128, 128) bf16
            _resident_spec(params["wl1_h_t"].shape),    # (128, 128) bf16
            _resident_spec(params["small"].shape),      # (128, 8) f32
        ],
        out_specs=_data_spec(2, tb),                    # merged lane-dense heads
        compiler_params=pltpu.CompilerParams(
            dimension_semantics=("parallel",)),         # shards across v7x's 2 TCs
    )(state_t, p_row, params["w1_t"], params["w2_t"],
      params["wl1_h_t"], params["small"])

    out_l = out[0, :B].reshape(B, 1)
    out_r = out[1, :B].reshape(B, 1)
    return out_l, out_r


def value_forward(params, state, action_param, *, action_ty):
    """Tensor path of Value.forward for one static action type.

    The fused kernel computes both heads (the right head is trivial and the
    shared trunk dominates), then the requested head is returned.
    """
    out_l, out_r = value_forward_both(params, state, action_param)
    if action_ty == "left":
        return out_l
    if action_ty == "right":
        return out_r
    raise ValueError(action_ty)

# TODO(synk): the list-input path (per-sample action types) is handled in the
# wrapper by stacking the states, calling value_forward_both once, and
# selecting per row between the two heads with jnp.where — no extra kernel.


def init_params(key, input_dim):
    """Torch-style U(-1/sqrt(fan_in), 1/sqrt(fan_in)) init.

    Returns (kernel_params, reference_params).  Kernel params are pre-packed in
    the feature-major layout the Pallas kernel consumes (weights in torch
    (out_features, in_features) layout, MXU weights in bf16, small params in
    one (128, 8) f32 block).
    """
    def linear(k, fan_in, fan_out):
        kw, kb = jax.random.split(k)
        lim = 1.0 / jnp.sqrt(jnp.float32(fan_in))
        w = jax.random.uniform(kw, (fan_out, fan_in), jnp.float32, -lim, lim)
        b = jax.random.uniform(kb, (fan_out,), jnp.float32, -lim, lim)
        return w, b

    ks = jax.random.split(key, 5)
    w1, b1 = linear(ks[0], input_dim, HIDDEN)        # shared[0]
    w2, b2 = linear(ks[1], HIDDEN, HIDDEN)           # shared[2]
    wl1, bl1 = linear(ks[2], HIDDEN + 1, HIDDEN)     # left head Linear(129,128)
    wl2, bl2 = linear(ks[3], HIDDEN, 1)              # left head Linear(128,1)
    wr, br = linear(ks[4], HIDDEN + 1, 1)            # right head Linear(129,1)

    small = jnp.zeros((HIDDEN, 8), jnp.float32)
    small = small.at[:, _COL_B1].set(b1)
    small = small.at[:, _COL_B2].set(b2)
    small = small.at[:, _COL_WL1P].set(wl1[:, HIDDEN])      # p-column of left layer 1
    small = small.at[:, _COL_BL1].set(bl1)
    small = small.at[:, _COL_WL2].set(wl2[0])               # left 128->1 projection
    small = small.at[:, _COL_WRH].set(wr[0, :HIDDEN])       # right head h-weights
    small = small.at[_ROW_BL2, _COL_SCALARS].set(bl2[0])
    small = small.at[_ROW_WRP, _COL_SCALARS].set(wr[0, HIDDEN])
    small = small.at[_ROW_BR, _COL_SCALARS].set(br[0])

    kernel_params = {
        "w1_t": w1,                                       # (128, D)   f32 (VPU layer 1)
        "w2_t": w2.astype(jnp.bfloat16),                  # (128, 128) bf16 (MXU)
        "wl1_h_t": wl1[:, :HIDDEN].astype(jnp.bfloat16),  # (128, 128) bf16 (MXU)
        "small": small,                                   # (128, 8)   f32 packed
    }
    ref_params = {"w1": w1, "b1": b1, "w2": w2, "b2": b2,
                  "wl1": wl1, "bl1": bl1, "wl2": wl2, "bl2": bl2,
                  "wr": wr, "br": br}
    return kernel_params, ref_params


def _reference_forward(ref, state, action_param, action_ty):
    """Pure-JAX f32 reference in the original torch layout."""
    h = jnp.maximum(state @ ref["w1"].T + ref["b1"], 0.0)
    h = jnp.maximum(h @ ref["w2"].T + ref["b2"], 0.0)
    p = action_param.reshape(-1, 1)
    cat = jnp.concatenate([h, p], axis=-1)
    if action_ty == "left":
        z = jnp.maximum(cat @ ref["wl1"].T + ref["bl1"], 0.0)
        return z @ ref["wl2"].T + ref["bl2"]
    return cat @ ref["wr"].T + ref["br"]


if __name__ == "__main__":
    key = jax.random.PRNGKey(0)
    k_param, k_state, k_act = jax.random.split(key, 3)

    batch = 8
    input_dim = 2  # MountainCar state: (position, velocity)

    params, ref = init_params(k_param, input_dim)
    state = jax.random.normal(k_state, (batch, input_dim), jnp.float32)
    action_param = jax.random.normal(k_act, (batch, 1), jnp.float32)

    out_left, out_right = value_forward_both(params, state, action_param)
    jax.block_until_ready((out_left, out_right))

    # single-action-type API still works (selects from the fused result)
    sel_left = value_forward(params, state, action_param, action_ty="left")
    sel_right = value_forward(params, state, action_param, action_ty="right")

    ref_left = _reference_forward(ref, state, action_param, "left")
    ref_right = _reference_forward(ref, state, action_param, "right")

    assert out_left.shape == (batch, 1) and out_right.shape == (batch, 1)
    # bf16 MXU matmuls (f32 accumulation) -> tolerance looser than pure f32.
    assert jnp.allclose(out_left, ref_left, atol=2e-2, rtol=2e-2)
    assert jnp.allclose(out_right, ref_right, atol=2e-2, rtol=2e-2)
    assert jnp.allclose(sel_left, ref_left, atol=2e-2, rtol=2e-2)
    assert jnp.allclose(sel_right, ref_right, atol=2e-2, rtol=2e-2)

    # exercise the multi-block (grid > 1, padded, megacore-parallel) path too
    big_b = 1500
    kb_s, kb_a = jax.random.split(jax.random.PRNGKey(1))
    big_state = jax.random.normal(kb_s, (big_b, input_dim), jnp.float32)
    big_ap = jax.random.normal(kb_a, (big_b, 1), jnp.float32)
    big_l, big_r = value_forward_both(params, big_state, big_ap)
    jax.block_until_ready((big_l, big_r))
    assert big_l.shape == (big_b, 1) and big_r.shape == (big_b, 1)
    assert jnp.allclose(big_l, _reference_forward(ref, big_state, big_ap, "left"),
                        atol=2e-2, rtol=2e-2)
    assert jnp.allclose(big_r, _reference_forward(ref, big_state, big_ap, "right"),
                        atol=2e-2, rtol=2e-2)

    print("KERNEL_OK")
</pallas_src>

<mosaic_0001>
module attributes {stable_mosaic.version = 11 : i64} {
  func.func @_fused_value_kernel(%arg0: i32, %arg1: memref<2x8xf32, #tpu.memory_space<vmem>>, %arg2: memref<1x8xf32, #tpu.memory_space<vmem>>, %arg3: memref<128x2xf32, #tpu.memory_space<vmem>>, %arg4: memref<128x128xbf16, #tpu.memory_space<vmem>>, %arg5: memref<128x128xbf16, #tpu.memory_space<vmem>>, %arg6: memref<128x8xf32, #tpu.memory_space<vmem>>, %arg7: memref<2x8xf32, #tpu.memory_space<vmem>>) attributes {dimension_semantics = [#tpu.dimension_semantics<parallel>], iteration_bounds = array<i64: 1>, scalar_prefetch = 0 : i64, scratch_operands = 0 : i64, tpu.core_type = #tpu.core_type<tc>, window_params = [{transform_indices = @transform_0, window_bounds = array<i64: 2, 8>}, {transform_indices = @transform_1, window_bounds = array<i64: 1, 8>}, {pipeline_mode = #tpu.pipeline_mode<synchronous>, transform_indices = @transform_2, window_bounds = array<i64: 128, 2>}, {pipeline_mode = #tpu.pipeline_mode<synchronous>, transform_indices = @transform_3, window_bounds = array<i64: 128, 128>}, {pipeline_mode = #tpu.pipeline_mode<synchronous>, transform_indices = @transform_4, window_bounds = array<i64: 128, 128>}, {pipeline_mode = #tpu.pipeline_mode<synchronous>, transform_indices = @transform_5, window_bounds = array<i64: 128, 8>}, {transform_indices = @transform_6, window_bounds = array<i64: 2, 8>}]} {
    %c0 = arith.constant 0 : index
    %c0_0 = arith.constant 0 : index
    %0 = vector.load %arg2[%c0, %c0_0] : memref<1x8xf32, #tpu.memory_space<vmem>>, vector<1x8xf32>
    %c0_1 = arith.constant 0 : index
    %c0_2 = arith.constant 0 : index
    %1 = vector.load %arg6[%c0_1, %c0_2] : memref<128x8xf32, #tpu.memory_space<vmem>>, vector<128x8xf32>
    %2 = vector.extract_strided_slice %1 {offsets = [0, 0], sizes = [128, 1], strides = [1, 1]} : vector<128x8xf32> to vector<128x1xf32>
    %3 = vector.extract_strided_slice %1 {offsets = [0, 1], sizes = [128, 1], strides = [1, 1]} : vector<128x8xf32> to vector<128x1xf32>
    %4 = vector.extract_strided_slice %1 {offsets = [0, 2], sizes = [128, 1], strides = [1, 1]} : vector<128x8xf32> to vector<128x1xf32>
    %5 = vector.extract_strided_slice %1 {offsets = [0, 3], sizes = [128, 1], strides = [1, 1]} : vector<128x8xf32> to vector<128x1xf32>
    %6 = vector.extract_strided_slice %1 {offsets = [0, 4], sizes = [128, 1], strides = [1, 1]} : vector<128x8xf32> to vector<128x1xf32>
    %7 = vector.extract_strided_slice %1 {offsets = [0, 5], sizes = [128, 1], strides = [1, 1]} : vector<128x8xf32> to vector<128x1xf32>
    %8 = vector.extract_strided_slice %1 {offsets = [0, 6], sizes = [1, 1], strides = [1, 1]} : vector<128x8xf32> to vector<1x1xf32>
    %9 = vector.extract_strided_slice %1 {offsets = [1, 6], sizes = [1, 1], strides = [1, 1]} : vector<128x8xf32> to vector<1x1xf32>
    %10 = vector.extract_strided_slice %1 {offsets = [2, 6], sizes = [1, 1], strides = [1, 1]} : vector<128x8xf32> to vector<1x1xf32>
    %c0_3 = arith.constant 0 : index
    %c0_4 = arith.constant 0 : index
    %11 = vector.load %arg3[%c0_3, %c0_4] : memref<128x2xf32, #tpu.memory_space<vmem>>, vector<128x1xf32>
    %c0_5 = arith.constant 0 : index
    %c0_6 = arith.constant 0 : index
    %12 = vector.load %arg1[%c0_5, %c0_6] : memref<2x8xf32, #tpu.memory_space<vmem>>, vector<1x8xf32>
    %13 = vector.broadcast %11 : vector<128x1xf32> to vector<128x8xf32>
    %14 = vector.broadcast %12 : vector<1x8xf32> to vector<128x8xf32>
    %15 = arith.mulf %13, %14 : vector<128x8xf32>
    %16 = vector.broadcast %2 : vector<128x1xf32> to vector<128x8xf32>
    %17 = arith.addf %16, %15 : vector<128x8xf32>
    %c0_7 = arith.constant 0 : index
    %c1 = arith.constant 1 : index
    %18 = vector.load %arg3[%c0_7, %c1] : memref<128x2xf32, #tpu.memory_space<vmem>>, vector<128x1xf32>
    %c1_8 = arith.constant 1 : index
    %c0_9 = arith.constant 0 : index
    %19 = vector.load %arg1[%c1_8, %c0_9] : memref<2x8xf32, #tpu.memory_space<vmem>>, vector<1x8xf32>
    %20 = vector.broadcast %18 : vector<128x1xf32> to vector<128x8xf32>
    %21 = vector.broadcast %19 : vector<1x8xf32> to vector<128x8xf32>
    %22 = arith.mulf %20, %21 : vector<128x8xf32>
    %23 = arith.addf %17, %22 : vector<128x8xf32>
    %cst = arith.constant 0.000000e+00 : f32
    %24 = vector.broadcast %cst : f32 to vector<128x8xf32>
    %25 = arith.maximumf %23, %24 : vector<128x8xf32>
    %c0_10 = arith.constant 0 : index
    %c0_11 = arith.constant 0 : index
    %26 = vector.load %arg4[%c0_10, %c0_11] : memref<128x128xbf16, #tpu.memory_space<vmem>>, vector<128x128xbf16>
    %27 = arith.truncf %25 : vector<128x8xf32> to vector<128x8xbf16>
    %cst_12 = arith.constant dense<0.000000e+00> : vector<128x8xf32>
    %28 = tpu.matmul %26, %27, %cst_12 {dimension_numbers = #tpu.dot_dimension_numbers<[1], [0], [0], [1], [0, 0, 1, 1], [], []>} : vector<128x128xbf16>, vector<128x8xbf16>, vector<128x8xf32> -> vector<128x8xf32>
    %29 = vector.broadcast %3 : vector<128x1xf32> to vector<128x8xf32>
    %30 = arith.addf %28, %29 : vector<128x8xf32>
    %cst_13 = arith.constant 0.000000e+00 : f32
    %31 = vector.broadcast %cst_13 : f32 to vector<128x8xf32>
    %32 = arith.maximumf %30, %31 : vector<128x8xf32>
    %c0_14 = arith.constant 0 : index
    %c0_15 = arith.constant 0 : index
    %33 = vector.load %arg5[%c0_14, %c0_15] : memref<128x128xbf16, #tpu.memory_space<vmem>>, vector<128x128xbf16>
    %34 = arith.truncf %32 : vector<128x8xf32> to vector<128x8xbf16>
    %cst_16 = arith.constant dense<0.000000e+00> : vector<128x8xf32>
    %35 = tpu.matmul %33, %34, %cst_16 {dimension_numbers = #tpu.dot_dimension_numbers<[1], [0], [0], [1], [0, 0, 1, 1], [], []>} : vector<128x128xbf16>, vector<128x8xbf16>, vector<128x8xf32> -> vector<128x8xf32>
    %36 = vector.broadcast %4 : vector<128x1xf32> to vector<128x8xf32>
    %37 = vector.broadcast %0 : vector<1x8xf32> to vector<128x8xf32>
    %38 = arith.mulf %36, %37 : vector<128x8xf32>
    %39 = arith.addf %35, %38 : vector<128x8xf32>
    %40 = vector.broadcast %5 : vector<128x1xf32> to vector<128x8xf32>
    %41 = arith.addf %39, %40 : vector<128x8xf32>
    %cst_17 = arith.constant 0.000000e+00 : f32
    %42 = vector.broadcast %cst_17 : f32 to vector<128x8xf32>
    %43 = arith.maximumf %41, %42 : vector<128x8xf32>
    %44 = vector.broadcast %6 : vector<128x1xf32> to vector<128x8xf32>
    %45 = arith.mulf %43, %44 : vector<128x8xf32>
    %cst_18 = arith.constant dense<0.000000e+00> : vector<8xf32>
    %46 = vector.multi_reduction <add>, %45, %cst_18 [0] : vector<128x8xf32> to vector<8xf32>
    %47 = vector.shape_cast %46 : vector<8xf32> to vector<1x8xf32>
    %48 = vector.broadcast %8 : vector<1x1xf32> to vector<1x8xf32>
    %49 = arith.addf %47, %48 : vector<1x8xf32>
    %50 = vector.broadcast %7 : vector<128x1xf32> to vector<128x8xf32>
    %51 = arith.mulf %32, %50 : vector<128x8xf32>
    %cst_19 = arith.constant dense<0.000000e+00> : vector<8xf32>
    %52 = vector.multi_reduction <add>, %51, %cst_19 [0] : vector<128x8xf32> to vector<8xf32>
    %53 = vector.shape_cast %52 : vector<8xf32> to vector<1x8xf32>
    %54 = vector.broadcast %9 : vector<1x1xf32> to vector<1x8xf32>
    %55 = arith.mulf %54, %0 : vector<1x8xf32>
    %56 = arith.addf %53, %55 : vector<1x8xf32>
    %57 = vector.broadcast %10 : vector<1x1xf32> to vector<1x8xf32>
    %58 = arith.addf %56, %57 : vector<1x8xf32>
    %c0_20 = arith.constant 0 : index
    %c0_21 = arith.constant 0 : index
    %59 = vector.load %arg7[%c0_20, %c0_21] : memref<2x8xf32, #tpu.memory_space<vmem>>, vector<1x8xf32>
    tpu.vector_store %arg7[%c0_20, %c0_21], %49 {strides = array<i32>} : memref<2x8xf32, #tpu.memory_space<vmem>>, vector<1x8xf32>,
    %c1_22 = arith.constant 1 : index
    %c0_23 = arith.constant 0 : index
    %60 = vector.load %arg7[%c1_22, %c0_23] : memref<2x8xf32, #tpu.memory_space<vmem>>, vector<1x8xf32>
    tpu.vector_store %arg7[%c1_22, %c0_23], %58 {strides = array<i32>} : memref<2x8xf32, #tpu.memory_space<vmem>>, vector<1x8xf32>,
    return
  }
  func.func @transform_0(%arg0: i32) -> (i32, i32) {
    %c0_i32 = arith.constant 0 : i32
    %c0_i32_0 = arith.constant 0 : i32
    return %c0_i32, %arg0 : i32, i32
  }
  func.func @transform_1(%arg0: i32) -> (i32, i32) {
    %c0_i32 = arith.constant 0 : i32
    %c0_i32_0 = arith.constant 0 : i32
    return %c0_i32, %arg0 : i32, i32
  }
  func.func @transform_2(%arg0: i32) -> (i32, i32) {
    %c0_i32 = arith.constant 0 : i32
    %c0_i32_0 = arith.constant 0 : i32
    %c0_i32_1 = arith.constant 0 : i32
    return %c0_i32, %c0_i32_0 : i32, i32
  }
  func.func @transform_3(%arg0: i32) -> (i32, i32) {
    %c0_i32 = arith.constant 0 : i32
    %c0_i32_0 = arith.constant 0 : i32
    %c0_i32_1 = arith.constant 0 : i32
    return %c0_i32, %c0_i32_0 : i32, i32
  }
  func.func @transform_4(%arg0: i32) -> (i32, i32) {
    %c0_i32 = arith.constant 0 : i32
    %c0_i32_0 = arith.constant 0 : i32
    %c0_i32_1 = arith.constant 0 : i32
    return %c0_i32, %c0_i32_0 : i32, i32
  }
  func.func @transform_5(%arg0: i32) -> (i32, i32) {
    %c0_i32 = arith.constant 0 : i32
    %c0_i32_0 = arith.constant 0 : i32
    %c0_i32_1 = arith.constant 0 : i32
    return %c0_i32, %c0_i32_0 : i32, i32
  }
  func.func @transform_6(%arg0: i32) -> (i32, i32) {
    %c0_i32 = arith.constant 0 : i32
    %c0_i32_0 = arith.constant 0 : i32
    return %c0_i32, %arg0 : i32, i32
  }
}

</mosaic_0001>

<llo_original>
// kernel: value_forward_both.1
$region0: #{value_forward_both.1}
  #allocation0 [shape = 'u32[]', space=smem, size = 0x4, offset = 0x4, fixed_abs, tag = 'smem constant byte address 0x4 - core index']
  #allocation1 [shape = 'u32[72,128]{1,0:T(1,128)}', space=vmem, size = 0x9000, scoped, tag = 'internal scratch']
  %s0 = inlined_call_operand.vmem [shape: f32[2,8], index: 0, kind: input, shape index: {}]
  %s1 = inlined_call_operand.vmem [shape: f32[1,8], index: 1, kind: input, shape index: {}]
  %s2 = inlined_call_operand.vmem [shape: f32[128,2], index: 2, kind: input, shape index: {}]
  %s3 = inlined_call_operand.vmem [shape: bf16[128,128], index: 3, kind: input, shape index: {}]
  %s4 = inlined_call_operand.vmem [shape: bf16[128,128], index: 4, kind: input, shape index: {}]
  %s5 = inlined_call_operand.vmem [shape: f32[128,8], index: 5, kind: input, shape index: {}]
  %s6 = inlined_call_operand.vmem [shape: f32[2,8], index: 6, kind: output, shape index: {}]
  %s7 = sld [smem:[#allocation0]]
  $region34: #{value_forward_both.1} parent=0
    _
  %s9 = ssub.s32 1, %s7
  %s10 = scalar_select 0, %s9, %s7
  // Predicated region
  $region2: #{value_forward_both.1} parent=0 // pred_check
    _
  $region3: #{value_forward_both.1} parent=0 // pred_check_branch
    %12 = sbr.rel (0) target = $region5
  $region4: #{value_forward_both.1} parent=0 // pred_region
    _
  $region5: #{value_forward_both.1} parent=0 // pred_fallthru
    _
  // Predicated region
  $region6: #{value_forward_both.1} parent=0 // pred_check
    _
  $region7: #{value_forward_both.1} parent=0 // pred_check_branch
    %14 = sbr.rel (0) target = $region9
  $region8: #{value_forward_both.1} parent=0 // pred_region
    _
  $region9: #{value_forward_both.1} parent=0 // pred_fallthru
    _
  // Predicated region
  $region10: #{value_forward_both.1} parent=0 // pred_check
    _
  $region11: #{value_forward_both.1} parent=0 // pred_check_branch
    %16 = sbr.rel (0) target = $region13
  $region12: #{value_forward_both.1} parent=0 // pred_region
    _
  $region13: #{value_forward_both.1} parent=0 // pred_fallthru
    _
  // Predicated region
  $region14: #{value_forward_both.1} parent=0 // pred_check
    _
  $region15: #{value_forward_both.1} parent=0 // pred_check_branch
    %18 = sbr.rel (0) target = $region17
  $region16: #{value_forward_both.1} parent=0 // pred_region
    _
  $region17: #{value_forward_both.1} parent=0 // pred_fallthru
    _
  // Predicated region
  $region18: #{value_forward_both.1} parent=0 // pred_check
    _
  $region19: #{value_forward_both.1} parent=0 // pred_check_branch
    %20 = sbr.rel (0) target = $region21
  $region20: #{value_forward_both.1} parent=0 // pred_region
    _
  $region21: #{value_forward_both.1} parent=0 // pred_fallthru
    _
  // Predicated region
  $region22: #{value_forward_both.1} parent=0 // pred_check
    _
  $region23: #{value_forward_both.1} parent=0 // pred_check_branch
    %22 = sbr.rel (0) target = $region25
  $region24: #{value_forward_both.1} parent=0 // pred_region
    _
  $region25: #{value_forward_both.1} parent=0 // pred_fallthru
    _
  %v23 = vld [vmem:[%s1] sm:$0x1]
  %v24 = vld [vmem:[%s5] sm:$0xff]
  %v25 = vld [vmem:[%s5 + $0x8] sm:$0xff]
  %v26 = vld [vmem:[%s5 + $0x10] sm:$0xff]
  %v27 = vld [vmem:[%s5 + $0x18] sm:$0xff]
  %v28 = vld [vmem:[%s5 + $0x20] sm:$0xff]
  %v29 = vld [vmem:[%s5 + $0x28] sm:$0xff]
  %v30 = vld [vmem:[%s5 + $0x30] sm:$0xff]
  %v31 = vld [vmem:[%s5 + $0x38] sm:$0xff]
  %v32 = vld [vmem:[%s5 + $0x40] sm:$0xff]
  %v33 = vld [vmem:[%s5 + $0x48] sm:$0xff]
  %v34 = vld [vmem:[%s5 + $0x50] sm:$0xff]
  %v35 = vld [vmem:[%s5 + $0x58] sm:$0xff]
  %v36 = vld [vmem:[%s5 + $0x60] sm:$0xff]
  %v37 = vld [vmem:[%s5 + $0x68] sm:$0xff]
  %v38 = vld [vmem:[%s5 + $0x70] sm:$0xff]
  %v39 = vld [vmem:[%s5 + $0x78] sm:$0xff]
  %v40 = vld [vmem:[%s2] sm:$0xff]
  %v41 = vld [vmem:[%s2 + $0x8] sm:$0xff]
  %v42 = vld [vmem:[%s2 + $0x10] sm:$0xff]
  %v43 = vld [vmem:[%s2 + $0x18] sm:$0xff]
  %v44 = vld [vmem:[%s2 + $0x20] sm:$0xff]
  %v45 = vld [vmem:[%s2 + $0x28] sm:$0xff]
  %v46 = vld [vmem:[%s2 + $0x30] sm:$0xff]
  %v47 = vld [vmem:[%s2 + $0x38] sm:$0xff]
  %v48 = vld [vmem:[%s2 + $0x40] sm:$0xff]
  %v49 = vld [vmem:[%s2 + $0x48] sm:$0xff]
  %v50 = vld [vmem:[%s2 + $0x50] sm:$0xff]
  %v51 = vld [vmem:[%s2 + $0x58] sm:$0xff]
  %v52 = vld [vmem:[%s2 + $0x60] sm:$0xff]
  %v53 = vld [vmem:[%s2 + $0x68] sm:$0xff]
  %v54 = vld [vmem:[%s2 + $0x70] sm:$0xff]
  %v55 = vld [vmem:[%s2 + $0x78] sm:$0xff]
  %v56 = vld [vmem:[%s0] sm:$0x1]
  %58 = vset.pattern.permute.xlu0 0
  %59 = vperm.xlu0 %58, %v40
  %v60 = vpop.permute.xlu0 %59
  %63 = vset.pattern.permute.xlu0 0
  %64 = vperm.xlu0 %63, %v41
  %v65 = vpop.permute.xlu0 %64
  %68 = vset.pattern.permute.xlu0 0
  %69 = vperm.xlu0 %68, %v42
  %v70 = vpop.permute.xlu0 %69
  %73 = vset.pattern.permute.xlu0 0
  %74 = vperm.xlu0 %73, %v43
  %v75 = vpop.permute.xlu0 %74
  %78 = vset.pattern.permute.xlu0 0
  %79 = vperm.xlu0 %78, %v44
  %v80 = vpop.permute.xlu0 %79
  %83 = vset.pattern.permute.xlu0 0
  %84 = vperm.xlu0 %83, %v45
  %v85 = vpop.permute.xlu0 %84
  %88 = vset.pattern.permute.xlu0 0
  %89 = vperm.xlu0 %88, %v46
  %v90 = vpop.permute.xlu0 %89
  %93 = vset.pattern.permute.xlu0 0
  %94 = vperm.xlu0 %93, %v47
  %v95 = vpop.permute.xlu0 %94
  %98 = vset.pattern.permute.xlu0 0
  %99 = vperm.xlu0 %98, %v48
  %v100 = vpop.permute.xlu0 %99
  %103 = vset.pattern.permute.xlu0 0
  %104 = vperm.xlu0 %103, %v49
  %v105 = vpop.permute.xlu0 %104
  %108 = vset.pattern.permute.xlu0 0
  %109 = vperm.xlu0 %108, %v50
  %v110 = vpop.permute.xlu0 %109
  %113 = vset.pattern.permute.xlu0 0
  %114 = vperm.xlu0 %113, %v51
  %v115 = vpop.permute.xlu0 %114
  %118 = vset.pattern.permute.xlu0 0
  %119 = vperm.xlu0 %118, %v52
  %v120 = vpop.permute.xlu0 %119
  %123 = vset.pattern.permute.xlu0 0
  %124 = vperm.xlu0 %123, %v53
  %v125 = vpop.permute.xlu0 %124
  %128 = vset.pattern.permute.xlu0 0
  %129 = vperm.xlu0 %128, %v54
  %v130 = vpop.permute.xlu0 %129
  %133 = vset.pattern.permute.xlu0 0
  %134 = vperm.xlu0 %133, %v55
  %v135 = vpop.permute.xlu0 %134
  %v137 = vperm.slane %v56, 0
  %v138 = vmul.f32 %v60, %v137
  %v139 = vmul.f32 %v65, %v137
  %v140 = vmul.f32 %v70, %v137
  %v141 = vmul.f32 %v75, %v137
  %v142 = vmul.f32 %v80, %v137
  %v143 = vmul.f32 %v85, %v137
  %v144 = vmul.f32 %v90, %v137
  %v145 = vmul.f32 %v95, %v137
  %v146 = vmul.f32 %v100, %v137
  %v147 = vmul.f32 %v105, %v137
  %v148 = vmul.f32 %v110, %v137
  %v149 = vmul.f32 %v115, %v137
  %v150 = vmul.f32 %v120, %v137
  %v151 = vmul.f32 %v125, %v137
  %v152 = vmul.f32 %v130, %v137
  %v153 = vmul.f32 %v135, %v137
  %155 = vset.pattern.permute.xlu0 0
  %156 = vperm.xlu0 %155, %v24
  %v157 = vpop.permute.xlu0 %156
  %160 = vset.pattern.permute.xlu0 0
  %161 = vperm.xlu0 %160, %v25
  %v162 = vpop.permute.xlu0 %161
  %165 = vset.pattern.permute.xlu0 0
  %166 = vperm.xlu0 %165, %v26
  %v167 = vpop.permute.xlu0 %166
  %170 = vset.pattern.permute.xlu0 0
  %171 = vperm.xlu0 %170, %v27
  %v172 = vpop.permute.xlu0 %171
  %175 = vset.pattern.permute.xlu0 0
  %176 = vperm.xlu0 %175, %v28
  %v177 = vpop.permute.xlu0 %176
  %180 = vset.pattern.permute.xlu0 0
  %181 = vperm.xlu0 %180, %v29
  %v182 = vpop.permute.xlu0 %181
  %185 = vset.pattern.permute.xlu0 0
  %186 = vperm.xlu0 %185, %v30
  %v187 = vpop.permute.xlu0 %186
  %190 = vset.pattern.permute.xlu0 0
  %191 = vperm.xlu0 %190, %v31
  %v192 = vpop.permute.xlu0 %191
  %195 = vset.pattern.permute.xlu0 0
  %196 = vperm.xlu0 %195, %v32
  %v197 = vpop.permute.xlu0 %196
  %200 = vset.pattern.permute.xlu0 0
  %201 = vperm.xlu0 %200, %v33
  %v202 = vpop.permute.xlu0 %201
  %205 = vset.pattern.permute.xlu0 0
  %206 = vperm.xlu0 %205, %v34
  %v207 = vpop.permute.xlu0 %206
  %210 = vset.pattern.permute.xlu0 0
  %211 = vperm.xlu0 %210, %v35
  %v212 = vpop.permute.xlu0 %211
  %215 = vset.pattern.permute.xlu0 0
  %216 = vperm.xlu0 %215, %v36
  %v217 = vpop.permute.xlu0 %216
  %220 = vset.pattern.permute.xlu0 0
  %221 = vperm.xlu0 %220, %v37
  %v222 = vpop.permute.xlu0 %221
  %225 = vset.pattern.permute.xlu0 0
  %226 = vperm.xlu0 %225, %v38
  %v227 = vpop.permute.xlu0 %226
  %230 = vset.pattern.permute.xlu0 0
  %231 = vperm.xlu0 %230, %v39
  %v232 = vpop.permute.xlu0 %231
  %v234 = vadd.f32 %v157, %v138
  %v235 = vadd.f32 %v162, %v139
  %v236 = vadd.f32 %v167, %v140
  %v237 = vadd.f32 %v172, %v141
  %v238 = vadd.f32 %v177, %v142
  %v239 = vadd.f32 %v182, %v143
  %v240 = vadd.f32 %v187, %v144
  %v241 = vadd.f32 %v192, %v145
  %v242 = vadd.f32 %v197, %v146
  %v243 = vadd.f32 %v202, %v147
  %v244 = vadd.f32 %v207, %v148
  %v245 = vadd.f32 %v212, %v149
  %v246 = vadd.f32 %v217, %v150
  %v247 = vadd.f32 %v222, %v151
  %v248 = vadd.f32 %v227, %v152
  %v249 = vadd.f32 %v232, %v153
  %v250 = vld [vmem:[%s0 + $0x1] sm:$0x1]
  %251 = vset.pattern.permute.xlu0 1
  %252 = vperm.xlu0 %251, %v40
  %v253 = vpop.permute.xlu0 %252
  %255 = vset.pattern.permute.xlu0 1
  %256 = vperm.xlu0 %255, %v41
  %v257 = vpop.permute.xlu0 %256
  %259 = vset.pattern.permute.xlu0 1
  %260 = vperm.xlu0 %259, %v42
  %v261 = vpop.permute.xlu0 %260
  %263 = vset.pattern.permute.xlu0 1
  %264 = vperm.xlu0 %263, %v43
  %v265 = vpop.permute.xlu0 %264
  %267 = vset.pattern.permute.xlu0 1
  %268 = vperm.xlu0 %267, %v44
  %v269 = vpop.permute.xlu0 %268
  %271 = vset.pattern.permute.xlu0 1
  %272 = vperm.xlu0 %271, %v45
  %v273 = vpop.permute.xlu0 %272
  %275 = vset.pattern.permute.xlu0 1
  %276 = vperm.xlu0 %275, %v46
  %v277 = vpop.permute.xlu0 %276
  %279 = vset.pattern.permute.xlu0 1
  %280 = vperm.xlu0 %279, %v47
  %v281 = vpop.permute.xlu0 %280
  %283 = vset.pattern.permute.xlu0 1
  %284 = vperm.xlu0 %283, %v48
  %v285 = vpop.permute.xlu0 %284
  %287 = vset.pattern.permute.xlu0 1
  %288 = vperm.xlu0 %287, %v49
  %v289 = vpop.permute.xlu0 %288
  %291 = vset.pattern.permute.xlu0 1
  %292 = vperm.xlu0 %291, %v50
  %v293 = vpop.permute.xlu0 %292
  %295 = vset.pattern.permute.xlu0 1
  %296 = vperm.xlu0 %295, %v51
  %v297 = vpop.permute.xlu0 %296
  %299 = vset.pattern.permute.xlu0 1
  %300 = vperm.xlu0 %299, %v52
  %v301 = vpop.permute.xlu0 %300
  %303 = vset.pattern.permute.xlu0 1
  %304 = vperm.xlu0 %303, %v53
  %v305 = vpop.permute.xlu0 %304
  %307 = vset.pattern.permute.xlu0 1
  %308 = vperm.xlu0 %307, %v54
  %v309 = vpop.permute.xlu0 %308
  %311 = vset.pattern.permute.xlu0 1
  %312 = vperm.xlu0 %311, %v55
  %v313 = vpop.permute.xlu0 %312
  %v315 = vperm.slane %v250, 0
  %v316 = vmul.f32 %v253, %v315
  %v317 = vmul.f32 %v257, %v315
  %v318 = vmul.f32 %v261, %v315
  %v319 = vmul.f32 %v265, %v315
  %v320 = vmul.f32 %v269, %v315
  %v321 = vmul.f32 %v273, %v315
  %v322 = vmul.f32 %v277, %v315
  %v323 = vmul.f32 %v281, %v315
  %v324 = vmul.f32 %v285, %v315
  %v325 = vmul.f32 %v289, %v315
  %v326 = vmul.f32 %v293, %v315
  %v327 = vmul.f32 %v297, %v315
  %v328 = vmul.f32 %v301, %v315
  %v329 = vmul.f32 %v305, %v315
  %v330 = vmul.f32 %v309, %v315
  %v331 = vmul.f32 %v313, %v315
  %v332 = vadd.f32 %v234, %v316
  %v333 = vadd.f32 %v235, %v317
  %v334 = vadd.f32 %v236, %v318
  %v335 = vadd.f32 %v237, %v319
  %v336 = vadd.f32 %v238, %v320
  %v337 = vadd.f32 %v239, %v321
  %v338 = vadd.f32 %v240, %v322
  %v339 = vadd.f32 %v241, %v323
  %v340 = vadd.f32 %v242, %v324
  %v341 = vadd.f32 %v243, %v325
  %v342 = vadd.f32 %v244, %v326
  %v343 = vadd.f32 %v245, %v327
  %v344 = vadd.f32 %v246, %v328
  %v345 = vadd.f32 %v247, %v329
  %v346 = vadd.f32 %v248, %v330
  %v347 = vadd.f32 %v249, %v331
  %v348 = vmax.f32 %v332, 0.0
  %v349 = vmax.f32 %v333, 0.0
  %v350 = vmax.f32 %v334, 0.0
  %v351 = vmax.f32 %v335, 0.0
  %v352 = vmax.f32 %v336, 0.0
  %v353 = vmax.f32 %v337, 0.0
  %v354 = vmax.f32 %v338, 0.0
  %v355 = vmax.f32 %v339, 0.0
  %v356 = vmax.f32 %v340, 0.0
  %v357 = vmax.f32 %v341, 0.0
  %v358 = vmax.f32 %v342, 0.0
  %v359 = vmax.f32 %v343, 0.0
  %v360 = vmax.f32 %v344, 0.0
  %v361 = vmax.f32 %v345, 0.0
  %v362 = vmax.f32 %v346, 0.0
  %v363 = vmax.f32 %v347, 0.0
  %v364 = vld [vmem:[%s3] sm:$0xf]
  %v365 = vld [vmem:[%s3 + $0x4] sm:$0xf]
  %v366 = vld [vmem:[%s3 + $0x8] sm:$0xf]
  %v367 = vld [vmem:[%s3 + $0xc] sm:$0xf]
  %v368 = vld [vmem:[%s3 + $0x10] sm:$0xf]
  %v369 = vld [vmem:[%s3 + $0x14] sm:$0xf]
  %v370 = vld [vmem:[%s3 + $0x18] sm:$0xf]
  %v371 = vld [vmem:[%s3 + $0x1c] sm:$0xf]
  %v372 = vld [vmem:[%s3 + $0x20] sm:$0xf]
  %v373 = vld [vmem:[%s3 + $0x24] sm:$0xf]
  %v374 = vld [vmem:[%s3 + $0x28] sm:$0xf]
  %v375 = vld [vmem:[%s3 + $0x2c] sm:$0xf]
  %v376 = vld [vmem:[%s3 + $0x30] sm:$0xf]
  %v377 = vld [vmem:[%s3 + $0x34] sm:$0xf]
  %v378 = vld [vmem:[%s3 + $0x38] sm:$0xf]
  %v379 = vld [vmem:[%s3 + $0x3c] sm:$0xf]
  %v380 = vpack.c.bf16 %v349, %v348
  %v381 = vpack.c.bf16 %v351, %v350
  %v382 = vpack.c.bf16 %v353, %v352
  %v383 = vpack.c.bf16 %v355, %v354
  %v384 = vpack.c.bf16 %v357, %v356
  %v385 = vpack.c.bf16 %v359, %v358
  %v386 = vpack.c.bf16 %v361, %v360
  %v387 = vpack.c.bf16 %v363, %v362
  %388 = vset.pattern.permute.xlu0 1
  %389 = vperm.xlu0 %388, %v24
  %v390 = vpop.permute.xlu0 %389
  %392 = vset.pattern.permute.xlu0 1
  %393 = vperm.xlu0 %392, %v25
  %v394 = vpop.permute.xlu0 %393
  %396 = vset.pattern.permute.xlu0 1
  %397 = vperm.xlu0 %396, %v26
  %v398 = vpop.permute.xlu0 %397
  %400 = vset.pattern.permute.xlu0 1
  %401 = vperm.xlu0 %400, %v27
  %v402 = vpop.permute.xlu0 %401
  %404 = vset.pattern.permute.xlu0 1
  %405 = vperm.xlu0 %404, %v28
  %v406 = vpop.permute.xlu0 %405
  %408 = vset.pattern.permute.xlu0 1
  %409 = vperm.xlu0 %408, %v29
  %v410 = vpop.permute.xlu0 %409
  %412 = vset.pattern.permute.xlu0 1
  %413 = vperm.xlu0 %412, %v30
  %v414 = vpop.permute.xlu0 %413
  %416 = vset.pattern.permute.xlu0 1
  %417 = vperm.xlu0 %416, %v31
  %v418 = vpop.permute.xlu0 %417
  %420 = vset.pattern.permute.xlu0 1
  %421 = vperm.xlu0 %420, %v32
  %v422 = vpop.permute.xlu0 %421
  %424 = vset.pattern.permute.xlu0 1
  %425 = vperm.xlu0 %424, %v33
  %v426 = vpop.permute.xlu0 %425
  %428 = vset.pattern.permute.xlu0 1
  %429 = vperm.xlu0 %428, %v34
  %v430 = vpop.permute.xlu0 %429
  %432 = vset.pattern.permute.xlu0 1
  %433 = vperm.xlu0 %432, %v35
  %v434 = vpop.permute.xlu0 %433
  %436 = vset.pattern.permute.xlu0 1
  %437 = vperm.xlu0 %436, %v36
  %v438 = vpop.permute.xlu0 %437
  %440 = vset.pattern.permute.xlu0 1
  %441 = vperm.xlu0 %440, %v37
  %v442 = vpop.permute.xlu0 %441
  %444 = vset.pattern.permute.xlu0 1
  %445 = vperm.xlu0 %444, %v38
  %v446 = vpop.permute.xlu0 %445
  %448 = vset.pattern.permute.xlu0 1
  %449 = vperm.xlu0 %448, %v39
  %v450 = vpop.permute.xlu0 %449
  %v468 = vunpack.c.l.b16 %v364
  %v469 = vunpack.c.l.b16 %v365
  %v470 = vunpack.c.l.b16 %v366
  %v471 = vunpack.c.l.b16 %v367
  %v472 = vunpack.c.l.b16 %v368
  %v473 = vunpack.c.l.b16 %v369
  %v474 = vunpack.c.l.b16 %v370
  %v475 = vunpack.c.l.b16 %v371
  %v476 = vunpack.c.l.b16 %v372
  %v477 = vunpack.c.l.b16 %v373
  %v478 = vunpack.c.l.b16 %v374
  %v479 = vunpack.c.l.b16 %v375
  %v480 = vunpack.c.l.b16 %v376
  %v481 = vunpack.c.l.b16 %v377
  %v482 = vunpack.c.l.b16 %v378
  %v483 = vunpack.c.l.b16 %v379
  %v484 = vpack.c.b16 %v469, %v468
  %v485 = vpack.c.b16 %v471, %v470
  %v486 = vpack.c.b16 %v473, %v472
  %v487 = vpack.c.b16 %v475, %v474
  %v488 = vpack.c.b16 %v477, %v476
  %v489 = vpack.c.b16 %v479, %v478
  %v490 = vpack.c.b16 %v481, %v480
  %v491 = vpack.c.b16 %v483, %v482
  %500 = vmatpush.bf16.msra.mxu0 %v387
  %501 = vmatpush.bf16.msra.mxu0 %v386
  %502 = vmatpush.bf16.msra.mxu0 %v385
  %503 = vmatpush.bf16.msra.mxu0 %v384
  %504 = vmatpush.bf16.msra.mxu0 %v383
  %505 = vmatpush.bf16.msra.mxu0 %v382
  %506 = vmatpush.bf16.msra.mxu0 %v381
  %507 = vmatpush.bf16.msra.mxu0 %v380
  %508 = vmatmul.bf16.gmra.mxu0 %v484
  %v509 = vpop.f32.mrf.mxu0
  %v510 = vadd.f32 %v390, %v509
  %v511 = vpop.f32.mrf.mxu0
  %v512 = vadd.f32 %v394, %v511
  %513 = vmatmul.bf16.gmra.mxu0 %v485
  %v514 = vpop.f32.mrf.mxu0
  %v515 = vadd.f32 %v398, %v514
  %v516 = vpop.f32.mrf.mxu0
  %v517 = vadd.f32 %v402, %v516
  %518 = vmatmul.bf16.gmra.mxu0 %v486
  %v519 = vpop.f32.mrf.mxu0
  %v520 = vadd.f32 %v406, %v519
  %v521 = vpop.f32.mrf.mxu0
  %v522 = vadd.f32 %v410, %v521
  %523 = vmatmul.bf16.gmra.mxu0 %v487
  %v524 = vpop.f32.mrf.mxu0
  %v525 = vadd.f32 %v414, %v524
  %v526 = vpop.f32.mrf.mxu0
  %v527 = vadd.f32 %v418, %v526
  %528 = vmatmul.bf16.gmra.mxu0 %v488
  %v529 = vpop.f32.mrf.mxu0
  %v530 = vadd.f32 %v422, %v529
  %v531 = vpop.f32.mrf.mxu0
  %v532 = vadd.f32 %v426, %v531
  %533 = vmatmul.bf16.gmra.mxu0 %v489
  %v534 = vpop.f32.mrf.mxu0
  %v535 = vadd.f32 %v430, %v534
  %v536 = vpop.f32.mrf.mxu0
  %v537 = vadd.f32 %v434, %v536
  %538 = vmatmul.bf16.gmra.mxu0 %v490
  %v539 = vpop.f32.mrf.mxu0
  %v540 = vadd.f32 %v438, %v539
  %v541 = vpop.f32.mrf.mxu0
  %v542 = vadd.f32 %v442, %v541
  %543 = vmatmul.bf16.gmra.mxu0 %v491
  %v544 = vpop.f32.mrf.mxu0
  %v545 = vadd.f32 %v446, %v544
  %v546 = vpop.f32.mrf.mxu0
  %v547 = vadd.f32 %v450, %v546
  %548 = vdwg.mxu0
  %v549 = vmax.f32 %v510, 0.0
  %v550 = vmax.f32 %v512, 0.0
  %v551 = vmax.f32 %v515, 0.0
  %v552 = vmax.f32 %v517, 0.0
  %v553 = vmax.f32 %v520, 0.0
  %v554 = vmax.f32 %v522, 0.0
  %v555 = vmax.f32 %v525, 0.0
  %v556 = vmax.f32 %v527, 0.0
  %v557 = vmax.f32 %v530, 0.0
  %v558 = vmax.f32 %v532, 0.0
  %v559 = vmax.f32 %v535, 0.0
  %v560 = vmax.f32 %v537, 0.0
  %v561 = vmax.f32 %v540, 0.0
  %v562 = vmax.f32 %v542, 0.0
  %v563 = vmax.f32 %v545, 0.0
  %v564 = vmax.f32 %v547, 0.0
  %v565 = vld [vmem:[%s4] sm:$0xf]
  %v566 = vld [vmem:[%s4 + $0x4] sm:$0xf]
  %v567 = vld [vmem:[%s4 + $0x8] sm:$0xf]
  %v568 = vld [vmem:[%s4 + $0xc] sm:$0xf]
  %v569 = vld [vmem:[%s4 + $0x10] sm:$0xf]
  %v570 = vld [vmem:[%s4 + $0x14] sm:$0xf]
  %v571 = vld [vmem:[%s4 + $0x18] sm:$0xf]
  %v572 = vld [vmem:[%s4 + $0x1c] sm:$0xf]
  %v573 = vld [vmem:[%s4 + $0x20] sm:$0xf]
  %v574 = vld [vmem:[%s4 + $0x24] sm:$0xf]
  %v575 = vld [vmem:[%s4 + $0x28] sm:$0xf]
  %v576 = vld [vmem:[%s4 + $0x2c] sm:$0xf]
  %v577 = vld [vmem:[%s4 + $0x30] sm:$0xf]
  %v578 = vld [vmem:[%s4 + $0x34] sm:$0xf]
  %v579 = vld [vmem:[%s4 + $0x38] sm:$0xf]
  %v580 = vld [vmem:[%s4 + $0x3c] sm:$0xf]
  %v581 = vpack.c.bf16 %v550, %v549
  %v582 = vpack.c.bf16 %v552, %v551
  %v583 = vpack.c.bf16 %v554, %v553
  %v584 = vpack.c.bf16 %v556, %v555
  %v585 = vpack.c.bf16 %v558, %v557
  %v586 = vpack.c.bf16 %v560, %v559
  %v587 = vpack.c.bf16 %v562, %v561
  %v588 = vpack.c.bf16 %v564, %v563
  %589 = vset.pattern.permute.xlu0 2
  %590 = vperm.xlu0 %589, %v24
  %v591 = vpop.permute.xlu0 %590
  %593 = vset.pattern.permute.xlu0 2
  %594 = vperm.xlu0 %593, %v25
  %v595 = vpop.permute.xlu0 %594
  %597 = vset.pattern.permute.xlu0 2
  %598 = vperm.xlu0 %597, %v26
  %v599 = vpop.permute.xlu0 %598
  %601 = vset.pattern.permute.xlu0 2
  %602 = vperm.xlu0 %601, %v27
  %v603 = vpop.permute.xlu0 %602
  %605 = vset.pattern.permute.xlu0 2
  %606 = vperm.xlu0 %605, %v28
  %v607 = vpop.permute.xlu0 %606
  %609 = vset.pattern.permute.xlu0 2
  %610 = vperm.xlu0 %609, %v29
  %v611 = vpop.permute.xlu0 %610
  %613 = vset.pattern.permute.xlu0 2
  %614 = vperm.xlu0 %613, %v30
  %v615 = vpop.permute.xlu0 %614
  %617 = vset.pattern.permute.xlu0 2
  %618 = vperm.xlu0 %617, %v31
  %v619 = vpop.permute.xlu0 %618
  %621 = vset.pattern.permute.xlu0 2
  %622 = vperm.xlu0 %621, %v32
  %v623 = vpop.permute.xlu0 %622
  %625 = vset.pattern.permute.xlu0 2
  %626 = vperm.xlu0 %625, %v33
  %v627 = vpop.permute.xlu0 %626
  %629 = vset.pattern.permute.xlu0 2
  %630 = vperm.xlu0 %629, %v34
  %v631 = vpop.permute.xlu0 %630
  %633 = vset.pattern.permute.xlu0 2
  %634 = vperm.xlu0 %633, %v35
  %v635 = vpop.permute.xlu0 %634
  %637 = vset.pattern.permute.xlu0 2
  %638 = vperm.xlu0 %637, %v36
  %v639 = vpop.permute.xlu0 %638
  %641 = vset.pattern.permute.xlu0 2
  %642 = vperm.xlu0 %641, %v37
  %v643 = vpop.permute.xlu0 %642
  %645 = vset.pattern.permute.xlu0 2
  %646 = vperm.xlu0 %645, %v38
  %v647 = vpop.permute.xlu0 %646
  %649 = vset.pattern.permute.xlu0 2
  %650 = vperm.xlu0 %649, %v39
  %v651 = vpop.permute.xlu0 %650
  %v654 = vperm.slane %v23, 0
  %v656 = vmul.f32 %v591, %v654
  %v657 = vmul.f32 %v595, %v654
  %v658 = vmul.f32 %v599, %v654
  %v659 = vmul.f32 %v603, %v654
  %v660 = vmul.f32 %v607, %v654
  %v661 = vmul.f32 %v611, %v654
  %v662 = vmul.f32 %v615, %v654
  %v663 = vmul.f32 %v619, %v654
  %v664 = vmul.f32 %v623, %v654
  %v665 = vmul.f32 %v627, %v654
  %v666 = vmul.f32 %v631, %v654
  %v667 = vmul.f32 %v635, %v654
  %v668 = vmul.f32 %v639, %v654
  %v669 = vmul.f32 %v643, %v654
  %v670 = vmul.f32 %v647, %v654
  %v671 = vmul.f32 %v651, %v654
  %v688 = vunpack.c.l.b16 %v565
  %v689 = vunpack.c.l.b16 %v566
  %v690 = vunpack.c.l.b16 %v567
  %v691 = vunpack.c.l.b16 %v568
  %v692 = vunpack.c.l.b16 %v569
  %v693 = vunpack.c.l.b16 %v570
  %v694 = vunpack.c.l.b16 %v571
  %v695 = vunpack.c.l.b16 %v572
  %v696 = vunpack.c.l.b16 %v573
  %v697 = vunpack.c.l.b16 %v574
  %v698 = vunpack.c.l.b16 %v575
  %v699 = vunpack.c.l.b16 %v576
  %v700 = vunpack.c.l.b16 %v577
  %v701 = vunpack.c.l.b16 %v578
  %v702 = vunpack.c.l.b16 %v579
  %v703 = vunpack.c.l.b16 %v580
  %v704 = vpack.c.b16 %v689, %v688
  %v705 = vpack.c.b16 %v691, %v690
  %v706 = vpack.c.b16 %v693, %v692
  %v707 = vpack.c.b16 %v695, %v694
  %v708 = vpack.c.b16 %v697, %v696
  %v709 = vpack.c.b16 %v699, %v698
  %v710 = vpack.c.b16 %v701, %v700
  %v711 = vpack.c.b16 %v703, %v702
  %720 = vmatpush.bf16.msra.mxu0 %v588
  %721 = vmatpush.bf16.msra.mxu0 %v587
  %722 = vmatpush.bf16.msra.mxu0 %v586
  %723 = vmatpush.bf16.msra.mxu0 %v585
  %724 = vmatpush.bf16.msra.mxu0 %v584
  %725 = vmatpush.bf16.msra.mxu0 %v583
  %726 = vmatpush.bf16.msra.mxu0 %v582
  %727 = vmatpush.bf16.msra.mxu0 %v581
  %728 = vmatmul.bf16.gmra.mxu0 %v704
  %v729 = vpop.f32.mrf.mxu0
  %v730 = vadd.f32 %v656, %v729
  %v731 = vpop.f32.mrf.mxu0
  %v732 = vadd.f32 %v657, %v731
  %733 = vmatmul.bf16.gmra.mxu0 %v705
  %v734 = vpop.f32.mrf.mxu0
  %v735 = vadd.f32 %v658, %v734
  %v736 = vpop.f32.mrf.mxu0
  %v737 = vadd.f32 %v659, %v736
  %738 = vmatmul.bf16.gmra.mxu0 %v706
  %v739 = vpop.f32.mrf.mxu0
  %v740 = vadd.f32 %v660, %v739
  %v741 = vpop.f32.mrf.mxu0
  %v742 = vadd.f32 %v661, %v741
  %743 = vmatmul.bf16.gmra.mxu0 %v707
  %v744 = vpop.f32.mrf.mxu0
  %v745 = vadd.f32 %v662, %v744
  %v746 = vpop.f32.mrf.mxu0
  %v747 = vadd.f32 %v663, %v746
  %748 = vmatmul.bf16.gmra.mxu0 %v708
  %v749 = vpop.f32.mrf.mxu0
  %v750 = vadd.f32 %v664, %v749
  %v751 = vpop.f32.mrf.mxu0
  %v752 = vadd.f32 %v665, %v751
  %753 = vmatmul.bf16.gmra.mxu0 %v709
  %v754 = vpop.f32.mrf.mxu0
  %v755 = vadd.f32 %v666, %v754
  %v756 = vpop.f32.mrf.mxu0
  %v757 = vadd.f32 %v667, %v756
  %758 = vmatmul.bf16.gmra.mxu0 %v710
  %v759 = vpop.f32.mrf.mxu0
  %v760 = vadd.f32 %v668, %v759
  %v761 = vpop.f32.mrf.mxu0
  %v762 = vadd.f32 %v669, %v761
  %763 = vmatmul.bf16.gmra.mxu0 %v711
  %v764 = vpop.f32.mrf.mxu0
  %v765 = vadd.f32 %v670, %v764
  %v766 = vpop.f32.mrf.mxu0
  %v767 = vadd.f32 %v671, %v766
  %768 = vdwg.mxu0
  %769 = vset.pattern.permute.xlu0 3
  %770 = vperm.xlu0 %769, %v24
  %v771 = vpop.permute.xlu0 %770
  %773 = vset.pattern.permute.xlu0 3
  %774 = vperm.xlu0 %773, %v25
  %v775 = vpop.permute.xlu0 %774
  %777 = vset.pattern.permute.xlu0 3
  %778 = vperm.xlu0 %777, %v26
  %v779 = vpop.permute.xlu0 %778
  %781 = vset.pattern.permute.xlu0 3
  %782 = vperm.xlu0 %781, %v27
  %v783 = vpop.permute.xlu0 %782
  %785 = vset.pattern.permute.xlu0 3
  %786 = vperm.xlu0 %785, %v28
  %v787 = vpop.permute.xlu0 %786
  %789 = vset.pattern.permute.xlu0 3
  %790 = vperm.xlu0 %789, %v29
  %v791 = vpop.permute.xlu0 %790
  %793 = vset.pattern.permute.xlu0 3
  %794 = vperm.xlu0 %793, %v30
  %v795 = vpop.permute.xlu0 %794
  %797 = vset.pattern.permute.xlu0 3
  %798 = vperm.xlu0 %797, %v31
  %v799 = vpop.permute.xlu0 %798
  %801 = vset.pattern.permute.xlu0 3
  %802 = vperm.xlu0 %801, %v32
  %v803 = vpop.permute.xlu0 %802
  %805 = vset.pattern.permute.xlu0 3
  %806 = vperm.xlu0 %805, %v33
  %v807 = vpop.permute.xlu0 %806
  %809 = vset.pattern.permute.xlu0 3
  %810 = vperm.xlu0 %809, %v34
  %v811 = vpop.permute.xlu0 %810
  %813 = vset.pattern.permute.xlu0 3
  %814 = vperm.xlu0 %813, %v35
  %v815 = vpop.permute.xlu0 %814
  %817 = vset.pattern.permute.xlu0 3
  %818 = vperm.xlu0 %817, %v36
  %v819 = vpop.permute.xlu0 %818
  %821 = vset.pattern.permute.xlu0 3
  %822 = vperm.xlu0 %821, %v37
  %v823 = vpop.permute.xlu0 %822
  %825 = vset.pattern.permute.xlu0 3
  %826 = vperm.xlu0 %825, %v38
  %v827 = vpop.permute.xlu0 %826
  %829 = vset.pattern.permute.xlu0 3
  %830 = vperm.xlu0 %829, %v39
  %v831 = vpop.permute.xlu0 %830
  %v833 = vadd.f32 %v730, %v771
  %v834 = vadd.f32 %v732, %v775
  %v835 = vadd.f32 %v735, %v779
  %v836 = vadd.f32 %v737, %v783
  %v837 = vadd.f32 %v740, %v787
  %v838 = vadd.f32 %v742, %v791
  %v839 = vadd.f32 %v745, %v795
  %v840 = vadd.f32 %v747, %v799
  %v841 = vadd.f32 %v750, %v803
  %v842 = vadd.f32 %v752, %v807
  %v843 = vadd.f32 %v755, %v811
  %v844 = vadd.f32 %v757, %v815
  %v845 = vadd.f32 %v760, %v819
  %v846 = vadd.f32 %v762, %v823
  %v847 = vadd.f32 %v765, %v827
  %v848 = vadd.f32 %v767, %v831
  %v849 = vmax.f32 %v833, 0.0
  %v850 = vmax.f32 %v834, 0.0
  %v851 = vmax.f32 %v835, 0.0
  %v852 = vmax.f32 %v836, 0.0
  %v853 = vmax.f32 %v837, 0.0
  %v854 = vmax.f32 %v838, 0.0
  %v855 = vmax.f32 %v839, 0.0
  %v856 = vmax.f32 %v840, 0.0
  %v857 = vmax.f32 %v841, 0.0
  %v858 = vmax.f32 %v842, 0.0
  %v859 = vmax.f32 %v843, 0.0
  %v860 = vmax.f32 %v844, 0.0
  %v861 = vmax.f32 %v845, 0.0
  %v862 = vmax.f32 %v846, 0.0
  %v863 = vmax.f32 %v847, 0.0
  %v864 = vmax.f32 %v848, 0.0
  %865 = vset.pattern.permute.xlu0 4
  %866 = vperm.xlu0 %865, %v24
  %v867 = vpop.permute.xlu0 %866
  %869 = vset.pattern.permute.xlu0 4
  %870 = vperm.xlu0 %869, %v25
  %v871 = vpop.permute.xlu0 %870
  %873 = vset.pattern.permute.xlu0 4
  %874 = vperm.xlu0 %873, %v26
  %v875 = vpop.permute.xlu0 %874
  %877 = vset.pattern.permute.xlu0 4
  %878 = vperm.xlu0 %877, %v27
  %v879 = vpop.permute.xlu0 %878
  %881 = vset.pattern.permute.xlu0 4
  %882 = vperm.xlu0 %881, %v28
  %v883 = vpop.permute.xlu0 %882
  %885 = vset.pattern.permute.xlu0 4
  %886 = vperm.xlu0 %885, %v29
  %v887 = vpop.permute.xlu0 %886
  %889 = vset.pattern.permute.xlu0 4
  %890 = vperm.xlu0 %889, %v30
  %v891 = vpop.permute.xlu0 %890
  %893 = vset.pattern.permute.xlu0 4
  %894 = vperm.xlu0 %893, %v31
  %v895 = vpop.permute.xlu0 %894
  %897 = vset.pattern.permute.xlu0 4
  %898 = vperm.xlu0 %897, %v32
  %v899 = vpop.permute.xlu0 %898
  %901 = vset.pattern.permute.xlu0 4
  %902 = vperm.xlu0 %901, %v33
  %v903 = vpop.permute.xlu0 %902
  %905 = vset.pattern.permute.xlu0 4
  %906 = vperm.xlu0 %905, %v34
  %v907 = vpop.permute.xlu0 %906
  %909 = vset.pattern.permute.xlu0 4
  %910 = vperm.xlu0 %909, %v35
  %v911 = vpop.permute.xlu0 %910
  %913 = vset.pattern.permute.xlu0 4
  %914 = vperm.xlu0 %913, %v36
  %v915 = vpop.permute.xlu0 %914
  %917 = vset.pattern.permute.xlu0 4
  %918 = vperm.xlu0 %917, %v37
  %v919 = vpop.permute.xlu0 %918
  %921 = vset.pattern.permute.xlu0 4
  %922 = vperm.xlu0 %921, %v38
  %v923 = vpop.permute.xlu0 %922
  %925 = vset.pattern.permute.xlu0 4
  %926 = vperm.xlu0 %925, %v39
  %v927 = vpop.permute.xlu0 %926
  %v929 = vmul.f32 %v849, %v867
  %v930 = vmul.f32 %v850, %v871
  %v931 = vmul.f32 %v851, %v875
  %v932 = vmul.f32 %v852, %v879
  %v933 = vmul.f32 %v853, %v883
  %v934 = vmul.f32 %v854, %v887
  %v935 = vmul.f32 %v855, %v891
  %v936 = vmul.f32 %v856, %v895
  %v937 = vmul.f32 %v857, %v899
  %v938 = vmul.f32 %v858, %v903
  %v939 = vmul.f32 %v859, %v907
  %v940 = vmul.f32 %v860, %v911
  %v941 = vmul.f32 %v861, %v915
  %v942 = vmul.f32 %v862, %v919
  %v943 = vmul.f32 %v863, %v923
  %v944 = vmul.f32 %v864, %v927
  %vm945 = vcmask 64512
  %v946 = vsel %vm945, %v929, 0.0
  %v947 = vsel %vm945, %v930, 0.0
  %v948 = vadd.f32 %v946, %v947
  %v949 = vsel %vm945, %v931, 0.0
  %v950 = vadd.f32 %v948, %v949
  %v951 = vsel %vm945, %v932, 0.0
  %v952 = vadd.f32 %v950, %v951
  %v953 = vsel %vm945, %v933, 0.0
  %v954 = vadd.f32 %v952, %v953
  %v955 = vsel %vm945, %v934, 0.0
  %v956 = vadd.f32 %v954, %v955
  %v957 = vsel %vm945, %v935, 0.0
  %v958 = vadd.f32 %v956, %v957
  %v959 = vsel %vm945, %v936, 0.0
  %v960 = vadd.f32 %v958, %v959
  %v961 = vsel %vm945, %v937, 0.0
  %v962 = vadd.f32 %v960, %v961
  %v963 = vsel %vm945, %v938, 0.0
  %v964 = vadd.f32 %v962, %v963
  %v965 = vsel %vm945, %v939, 0.0
  %v966 = vadd.f32 %v964, %v965
  %v967 = vsel %vm945, %v940, 0.0
  %v968 = vadd.f32 %v966, %v967
  %v969 = vsel %vm945, %v941, 0.0
  %v970 = vadd.f32 %v968, %v969
  %v971 = vsel %vm945, %v942, 0.0
  %v972 = vadd.f32 %v970, %v971
  %v973 = vsel %vm945, %v943, 0.0
  %v974 = vadd.f32 %v972, %v973
  %v975 = vsel %vm945, %v944, 0.0
  %v976 = vadd.f32 %v974, %v975
  %v977 = vrot.slane %v976, 4
  %v978 = vadd.f32 %v976, %v977
  %v979 = vrot.slane %v978, 2
  %v980 = vadd.f32 %v978, %v979
  %v981 = vrot.slane %v980, 1
  %v982 = vadd.f32 %v980, %v981
  %983 = vset.pattern.permute.xlu0 6
  %984 = vperm.xlu0 %983, %v24
  %v985 = vpop.permute.xlu0 %984
  %v987 = vadd.f32 %v982, %v985
  %988 = vset.pattern.permute.xlu0 5
  %989 = vperm.xlu0 %988, %v24
  %v990 = vpop.permute.xlu0 %989
  %992 = vset.pattern.permute.xlu0 5
  %993 = vperm.xlu0 %992, %v25
  %v994 = vpop.permute.xlu0 %993
  %996 = vset.pattern.permute.xlu0 5
  %997 = vperm.xlu0 %996, %v26
  %v998 = vpop.permute.xlu0 %997
  %1000 = vset.pattern.permute.xlu0 5
  %1001 = vperm.xlu0 %1000, %v27
  %v1002 = vpop.permute.xlu0 %1001
  %1004 = vset.pattern.permute.xlu0 5
  %1005 = vperm.xlu0 %1004, %v28
  %v1006 = vpop.permute.xlu0 %1005
  %1008 = vset.pattern.permute.xlu0 5
  %1009 = vperm.xlu0 %1008, %v29
  %v1010 = vpop.permute.xlu0 %1009
  %1012 = vset.pattern.permute.xlu0 5
  %1013 = vperm.xlu0 %1012, %v30
  %v1014 = vpop.permute.xlu0 %1013
  %1016 = vset.pattern.permute.xlu0 5
  %1017 = vperm.xlu0 %1016, %v31
  %v1018 = vpop.permute.xlu0 %1017
  %1020 = vset.pattern.permute.xlu0 5
  %1021 = vperm.xlu0 %1020, %v32
  %v1022 = vpop.permute.xlu0 %1021
  %1024 = vset.pattern.permute.xlu0 5
  %1025 = vperm.xlu0 %1024, %v33
  %v1026 = vpop.permute.xlu0 %1025
  %1028 = vset.pattern.permute.xlu0 5
  %1029 = vperm.xlu0 %1028, %v34
  %v1030 = vpop.permute.xlu0 %1029
  %1032 = vset.pattern.permute.xlu0 5
  %1033 = vperm.xlu0 %1032, %v35
  %v1034 = vpop.permute.xlu0 %1033
  %1036 = vset.pattern.permute.xlu0 5
  %1037 = vperm.xlu0 %1036, %v36
  %v1038 = vpop.permute.xlu0 %1037
  %1040 = vset.pattern.permute.xlu0 5
  %1041 = vperm.xlu0 %1040, %v37
  %v1042 = vpop.permute.xlu0 %1041
  %1044 = vset.pattern.permute.xlu0 5
  %1045 = vperm.xlu0 %1044, %v38
  %v1046 = vpop.permute.xlu0 %1045
  %1048 = vset.pattern.permute.xlu0 5
  %1049 = vperm.xlu0 %1048, %v39
  %v1050 = vpop.permute.xlu0 %1049
  %v1052 = vmul.f32 %v549, %v990
  %v1053 = vmul.f32 %v550, %v994
  %v1054 = vmul.f32 %v551, %v998
  %v1055 = vmul.f32 %v552, %v1002
  %v1056 = vmul.f32 %v553, %v1006
  %v1057 = vmul.f32 %v554, %v1010
  %v1058 = vmul.f32 %v555, %v1014
  %v1059 = vmul.f32 %v556, %v1018
  %v1060 = vmul.f32 %v557, %v1022
  %v1061 = vmul.f32 %v558, %v1026
  %v1062 = vmul.f32 %v559, %v1030
  %v1063 = vmul.f32 %v560, %v1034
  %v1064 = vmul.f32 %v561, %v1038
  %v1065 = vmul.f32 %v562, %v1042
  %v1066 = vmul.f32 %v563, %v1046
  %v1067 = vmul.f32 %v564, %v1050
  %v1068 = vsel %vm945, %v1052, 0.0
  %v1069 = vsel %vm945, %v1053, 0.0
  %v1070 = vadd.f32 %v1068, %v1069
  %v1071 = vsel %vm945, %v1054, 0.0
  %v1072 = vadd.f32 %v1070, %v1071
  %v1073 = vsel %vm945, %v1055, 0.0
  %v1074 = vadd.f32 %v1072, %v1073
  %v1075 = vsel %vm945, %v1056, 0.0
  %v1076 = vadd.f32 %v1074, %v1075
  %v1077 = vsel %vm945, %v1057, 0.0
  %v1078 = vadd.f32 %v1076, %v1077
  %v1079 = vsel %vm945, %v1058, 0.0
  %v1080 = vadd.f32 %v1078, %v1079
  %v1081 = vsel %vm945, %v1059, 0.0
  %v1082 = vadd.f32 %v1080, %v1081
  %v1083 = vsel %vm945, %v1060, 0.0
  %v1084 = vadd.f32 %v1082, %v1083
  %v1085 = vsel %vm945, %v1061, 0.0
  %v1086 = vadd.f32 %v1084, %v1085
  %v1087 = vsel %vm945, %v1062, 0.0
  %v1088 = vadd.f32 %v1086, %v1087
  %v1089 = vsel %vm945, %v1063, 0.0
  %v1090 = vadd.f32 %v1088, %v1089
  %v1091 = vsel %vm945, %v1064, 0.0
  %v1092 = vadd.f32 %v1090, %v1091
  %v1093 = vsel %vm945, %v1065, 0.0
  %v1094 = vadd.f32 %v1092, %v1093
  %v1095 = vsel %vm945, %v1066, 0.0
  %v1096 = vadd.f32 %v1094, %v1095
  %v1097 = vsel %vm945, %v1067, 0.0
  %v1098 = vadd.f32 %v1096, %v1097
  %v1099 = vrot.slane %v1098, 4
  %v1100 = vadd.f32 %v1098, %v1099
  %v1101 = vrot.slane %v1100, 2
  %v1102 = vadd.f32 %v1100, %v1101
  %v1103 = vrot.slane %v1102, 1
  %v1104 = vadd.f32 %v1102, %v1103
  %v1105 = vmul.f32 %v985, %v654
  %v1106 = vadd.f32 %v1104, %v1105
  %v1107 = vrot.slane %v985, 1
  %v1109 = vadd.f32 %v1106, %v1107
  %vm1110 = vcmask 57344
  %1111 = vst.msk [vmem:[%s6] sm:$0x1] %vm1110, %v987
  %vm1112 = vcmask 58369
  %1113 = vst.msk [vmem:[%s6] sm:$0x2] %vm1112, %v1109
  // Predicated region
  $region26: #{value_forward_both.1} parent=0 // pred_check
    _
  $region27: #{value_forward_both.1} parent=0 // pred_check_branch
    %1115 = sbr.rel (0) target = $region29
  $region28: #{value_forward_both.1} parent=0 // pred_region
    _
  $region29: #{value_forward_both.1} parent=0 // pred_fallthru
    _
  // Predicated region
  $region30: #{value_forward_both.1} parent=0 // pred_check
    _
  $region31: #{value_forward_both.1} parent=0 // pred_check_branch
    %1117 = sbr.rel (0) target = $region33
  $region32: #{value_forward_both.1} parent=0 // pred_region
    _
  $region33: #{value_forward_both.1} parent=0 // pred_fallthru
    _

</llo_original>
